<compile_context>
chip_gen: v5e
topology: v5e:2x2
jax: 0.10.0
libtpu: 0.0.40
codegen_flags: <defaults>
</compile_context>

<pallas_src>
import functools

import jax
import jax.numpy as jnp
from jax.experimental import pallas as pl
from jax.experimental.pallas import tpu as pltpu


def _round_up(x, m):
    return ((x + m - 1) // m) * m


# ----------------------------- Pallas kernel -----------------------------
def _unembed_kernel(x_ref, w_ref, b_ref, o_ref, *, tm, x_resident):
    # x_ref: (M_pad, D) bf16 if resident else (tm, D) bf16
    # w_ref: (D, tv) bf16 | b_ref: (1, tv) f32 | o_ref: (tm, tv) f32
    if x_resident:
        # Whole x lives in VMEM; pick the rows for this grid step.
        start = pl.multiple_of(pl.program_id(1) * tm, tm)
        x = x_ref[pl.ds(start, tm), :]
    else:
        x = x_ref[...]
    o_ref[...] = (
        jnp.dot(x, w_ref[...], preferred_element_type=jnp.float32) + b_ref[...]
    )


# ----------------------------- wrapper -----------------------------
def unembed(normalized_resid_final, W_U, b_U, *, block_v=2048, block_m=512):
    B, S, D = normalized_resid_final.shape
    Dw, V = W_U.shape
    assert D == Dw, "d_model mismatch between activations and W_U"

    M = B * S

    # Activations: reshape + single bf16 cast (kernel consumes bf16 directly).
    x2 = normalized_resid_final.reshape(M, D)
    if x2.dtype != jnp.bfloat16:
        x2 = x2.astype(jnp.bfloat16)
    # W_U should be stored persistently in bf16 (converted once at load time);
    # only cast here if the caller did not.
    w = W_U if W_U.dtype == jnp.bfloat16 else W_U.astype(jnp.bfloat16)
    b = b_U.reshape(1, V).astype(jnp.float32)

    # --- tile selection: lane-dense multiples of (8, 128), pad instead of
    # falling back to full-extent blocks ---
    tm = _round_up(min(block_m, _round_up(M, 8)), 8)
    M_pad = _round_up(M, tm)

    tv = _round_up(min(block_v, _round_up(V, 128)), 128)
    V_pad = _round_up(V, tv)

    if M_pad != M:
        x2 = jnp.pad(x2, ((0, M_pad - M), (0, 0)))
    if V_pad != V:
        w = jnp.pad(w, ((0, 0), (0, V_pad - V)))
        b = jnp.pad(b, ((0, 0), (0, V_pad - V)))

    n_v = V_pad // tv
    n_m = M_pad // tm

    # Keep the whole activation matrix resident in VMEM when small enough:
    # constant block index -> DMA'd from HBM exactly once (GPT-2 scale x in
    # bf16 is only ~3 MiB).  Otherwise fall back to row-tiled x.
    x_bytes = M_pad * D * 2
    x_resident = x_bytes <= (16 << 20)

    if x_resident:
        x_spec = pl.BlockSpec((M_pad, D), lambda j, i: (0, 0))
    else:
        x_spec = pl.BlockSpec((tm, D), lambda j, i: (i, 0))

    kernel = functools.partial(_unembed_kernel, tm=tm, x_resident=x_resident)

    # Explicit scoped-VMEM budget derived from the chosen tiles
    # (double-buffered W / out, x counted conservatively), capped for v7x.
    w_blk = D * tv * 2
    o_blk = tm * tv * 4
    x_blk = x_bytes if x_resident else tm * D * 2
    needed = 2 * (w_blk + o_blk + x_blk) + 4 * tv
    vmem_limit = int(min(max(32 << 20, needed + (8 << 20)), 56 << 20))

    grid_spec = pltpu.PrefetchScalarGridSpec(
        num_scalar_prefetch=0,
        grid=(n_v, n_m),  # vocab outer (parallel), rows inner (W_U residency axis)
        in_specs=[
            x_spec,                                        # activations (bf16)
            pl.BlockSpec((D, tv), lambda j, i: (0, j)),    # W_U tile (bf16), resident over rows
            pl.BlockSpec((1, tv), lambda j, i: (0, j)),    # b_U tile (f32)
        ],
        out_specs=pl.BlockSpec((tm, tv), lambda j, i: (i, j)),
    )

    out = pl.pallas_call(
        kernel,
        out_shape=jax.ShapeDtypeStruct((M_pad, V_pad), jnp.float32),
        grid_spec=grid_spec,
        compiler_params=pltpu.CompilerParams(
            dimension_semantics=("parallel", "arbitrary"),
            vmem_limit_bytes=vmem_limit,
        ),
    )(x2, w, b)

    # TODO(synk): optionally emit bf16 logits on v6e if downstream allows it.
    return out[:M, :V].reshape(B, S, V)


# ----------------------------- pure-JAX reference -----------------------------
def unembed_ref(x, W_U, b_U):
    return jnp.einsum("bpd,dv->bpv", x, W_U) + b_U


# ----------------------------- main -----------------------------
if __name__ == "__main__":
    # Small shapes consistent with the module (d_model / d_vocab scaled down).
    B, S, D, V = 2, 8, 128, 1024
    INIT_RANGE = 0.02

    key = jax.random.PRNGKey(0)
    k_x, k_w, k_b = jax.random.split(key, 3)

    x = jax.random.normal(k_x, (B, S, D), jnp.float32)
    W_U = INIT_RANGE * jax.random.normal(k_w, (D, V), jnp.float32)
    # Module initializes b_U to zeros; use a small random bias here so the
    # bias-add path is actually exercised by the check.
    b_U = 0.01 * jax.random.normal(k_b, (V,), jnp.float32)

    # Simulate load-time conversion of the unembedding matrix to bf16 so the
    # wrapper does not pay a full-tensor cast per call.
    W_U_bf16 = W_U.astype(jnp.bfloat16)

    out = jax.block_until_ready(unembed(x, W_U_bf16, b_U))
    ref = jax.block_until_ready(unembed_ref(x, W_U, b_U))

    # bf16 matmul inputs with f32 accumulation -> small rounding error vs f32 ref.
    if not jnp.allclose(out, ref, rtol=2e-2, atol=2e-2):
        max_err = float(jnp.max(jnp.abs(out - ref)))
        raise AssertionError(f"mismatch vs reference, max abs err = {max_err}")

    print("KERNEL_OK")
</pallas_src>

<mosaic_0001>
module attributes {stable_mosaic.version = 11 : i64} {
  func.func @_unembed_kernel(%arg0: i32, %arg1: i32, %arg2: memref<16x128xbf16, #tpu.memory_space<vmem>>, %arg3: memref<128x1024xbf16, #tpu.memory_space<vmem>>, %arg4: memref<1x1024xf32, #tpu.memory_space<vmem>>, %arg5: memref<16x1024xf32, #tpu.memory_space<vmem>>) attributes {dimension_semantics = [#tpu.dimension_semantics<parallel>, #tpu.dimension_semantics<arbitrary>], iteration_bounds = array<i64: 1, 1>, scalar_prefetch = 0 : i64, scratch_operands = 0 : i64, tpu.core_type = #tpu.core_type<tc>, window_params = [{pipeline_mode = #tpu.pipeline_mode<synchronous>, transform_indices = @transform_0, window_bounds = array<i64: 16, 128>}, {transform_indices = @transform_1, window_bounds = array<i64: 128, 1024>}, {transform_indices = @transform_2, window_bounds = array<i64: 1, 1024>}, {transform_indices = @transform_3, window_bounds = array<i64: 16, 1024>}]} {
    %c16_i32 = arith.constant 16 : i32
    %0 = arith.muli %arg1, %c16_i32 : i32
    %1 = tpu.assume_multiple %0, 16 : i32
    %2 = arith.index_cast %1 : i32 to index
    %c0 = arith.constant 0 : index
    %3 = vector.load %arg2[%2, %c0] : memref<16x128xbf16, #tpu.memory_space<vmem>>, vector<16x128xbf16>
    %c0_0 = arith.constant 0 : index
    %c0_1 = arith.constant 0 : index
    %4 = vector.load %arg3[%c0_0, %c0_1] : memref<128x1024xbf16, #tpu.memory_space<vmem>>, vector<128x1024xbf16>
    %cst = arith.constant dense<0.000000e+00> : vector<16x1024xf32>
    %5 = tpu.matmul %3, %4, %cst {dimension_numbers = #tpu.dot_dimension_numbers<[1], [0], [0], [1], [0, 0, 1, 1], [], []>} : vector<16x128xbf16>, vector<128x1024xbf16>, vector<16x1024xf32> -> vector<16x1024xf32>
    %c0_2 = arith.constant 0 : index
    %c0_3 = arith.constant 0 : index
    %6 = vector.load %arg4[%c0_2, %c0_3] : memref<1x1024xf32, #tpu.memory_space<vmem>>, vector<1x1024xf32>
    %7 = vector.broadcast %6 : vector<1x1024xf32> to vector<16x1024xf32>
    %8 = arith.addf %5, %7 : vector<16x1024xf32>
    %c0_4 = arith.constant 0 : index
    %c0_5 = arith.constant 0 : index
    %9 = vector.load %arg5[%c0_4, %c0_5] : memref<16x1024xf32, #tpu.memory_space<vmem>>, vector<16x1024xf32>
    tpu.vector_store %arg5[%c0_4, %c0_5], %8 {strides = array<i32>} : memref<16x1024xf32, #tpu.memory_space<vmem>>, vector<16x1024xf32>,
    return
  }
  func.func @transform_0(%arg0: i32, %arg1: i32) -> (i32, i32) {
    %c0_i32 = arith.constant 0 : i32
    %c0_i32_0 = arith.constant 0 : i32
    %c0_i32_1 = arith.constant 0 : i32
    return %c0_i32, %c0_i32_0 : i32, i32
  }
  func.func @transform_1(%arg0: i32, %arg1: i32) -> (i32, i32) {
    %c0_i32 = arith.constant 0 : i32
    %c0_i32_0 = arith.constant 0 : i32
    return %c0_i32, %arg0 : i32, i32
  }
  func.func @transform_2(%arg0: i32, %arg1: i32) -> (i32, i32) {
    %c0_i32 = arith.constant 0 : i32
    %c0_i32_0 = arith.constant 0 : i32
    return %c0_i32, %arg0 : i32, i32
  }
  func.func @transform_3(%arg0: i32, %arg1: i32) -> (i32, i32) {
    %c0_i32 = arith.constant 0 : i32
    return %arg1, %arg0 : i32, i32
  }
}

</mosaic_0001>

<llo_original>
// kernel: tpu_custom_call.1
$region0: #{tpu_custom_call.1}
  #allocation0 [shape = 'u32[]', space=smem, size = 0x4, offset = 0x4, fixed_abs, tag = 'smem constant byte address 0x4 - core index']
  #allocation1 [shape = 'u32[72,128]{1,0:T(1,128)}', space=vmem, size = 0x9000, scoped, tag = 'internal scratch']
  %s0 = inlined_call_operand.hbm [shape: bf16[16,128], index: 0, kind: input, shape index: {}]
  %s1 = inlined_call_operand.hbm [shape: bf16[128,1024], index: 1, kind: input, shape index: {}]
  %s2 = inlined_call_operand.hbm [shape: f32[1,1024], index: 2, kind: input, shape index: {}]
  %s3 = inlined_call_operand.hbm [shape: f32[16,1024], index: 3, kind: output, shape index: {}]
  %s4 = sld [smem:[#allocation0]]
  $region34: #{tpu_custom_call.1} parent=0
    _
  %s6 = ssub.s32 1, %s4
  %s7 = scalar_select 0, %s6, %s4
  $region1: #{tpu_custom_call.1} parent=0
    #allocation2 [shape = 'u8[4096]{0}', space=vmem, size = 0x1000, scoped, tag = 'input window, operand 0, single buffered']
    #allocation3 [shape = 's32[1]{0}', space=sflag, size = 0x4, scoped, tag = 'scoped memory for tpu_custom_call.1']
    #allocation4 [shape = 's32[1]{0}', space=sflag, size = 0x4, scoped, tag = 'scoped memory for tpu_custom_call.1']
    #allocation5 [shape = 'u8[262144]{0}', space=vmem, size = 0x40000, scoped, tag = 'input window, operand 1, single buffered']
    #allocation6 [shape = 's32[1]{0}', space=sflag, size = 0x4, scoped, tag = 'scoped memory for tpu_custom_call.1']
    #allocation7 [shape = 'u8[4096]{0}', space=vmem, size = 0x1000, scoped, tag = 'input window, operand 2, single buffered']
    #allocation8 [shape = 'u8[65536]{0}', space=vmem, size = 0x10000, scoped, tag = 'output window, operand 0, single buffered']
    %8 = vsyncpa [#allocation3], 0
    %9 = vsyncpa [#allocation6], 0
    %10 = vsyncpa [#allocation4], 0
    // Predicated region
    $region2: #{tpu_custom_call.1} parent=1 // pred_check
      _
    $region3: #{tpu_custom_call.1} parent=1 // pred_check_branch
      %12 = sbr.rel (0) target = $region5
    $region4: #{tpu_custom_call.1} parent=1 // pred_region
      %14 = vsyncadd [#allocation3], 0
      %s15 = sshll.u32 %s0, 4
      %s16 = int_to_ptr.hbm [resolvable:$true] %s15
      %s17 = sshll.u32 [#allocation2], 4
      %s18 = int_to_ptr.vmem [resolvable:$true] %s17
      %23 = dma.hbm_to_vmem [thread:$0]  %s16, 128, %s18, [#allocation3], 64, 64, 4
    $region5: #{tpu_custom_call.1} parent=1 // pred_fallthru
      _
    // Predicated region
    $region6: #{tpu_custom_call.1} parent=1 // pred_check
      _
    $region7: #{tpu_custom_call.1} parent=1 // pred_check_branch
      %25 = sbr.rel (0) target = $region9
    $region8: #{tpu_custom_call.1} parent=1 // pred_region
      %27 = vsyncadd [#allocation6], 0
      %s28 = sshll.u32 %s1, 4
      %s29 = int_to_ptr.hbm [resolvable:$true] %s28
      %s30 = sshll.u32 [#allocation5], 4
      %s31 = int_to_ptr.vmem [resolvable:$true] %s30
      %36 = dma.hbm_to_vmem [thread:$0]  %s29, 8192, %s31, [#allocation6], 512, 512, 32
    $region9: #{tpu_custom_call.1} parent=1 // pred_fallthru
      _
    // Predicated region
    $region10: #{tpu_custom_call.1} parent=1 // pred_check
      _
    $region11: #{tpu_custom_call.1} parent=1 // pred_check_branch
      %38 = sbr.rel (0) target = $region13
    $region12: #{tpu_custom_call.1} parent=1 // pred_region
      %40 = vsyncadd [#allocation6], 0
      %s42 = sshll.u32 %s2, 4
      %s43 = int_to_ptr.hbm [resolvable:$true] %s42
      %s44 = sshll.u32 [#allocation7], 4
      %s45 = int_to_ptr.vmem [resolvable:$true] %s44
      %47 = dma.hbm_to_vmem [thread:$0]  %s43, 128, %s45, [#allocation6]
    $region13: #{tpu_custom_call.1} parent=1 // pred_fallthru
      _
    // Predicated region
    $region14: #{tpu_custom_call.1} parent=1 // pred_check
      _
    $region15: #{tpu_custom_call.1} parent=1 // pred_check_branch
      %49 = sbr.rel (0) target = $region17
    $region16: #{tpu_custom_call.1} parent=1 // pred_region
      %51 = dma.done [#allocation3], 128
    $region17: #{tpu_custom_call.1} parent=1 // pred_fallthru
      _
    // Predicated region
    $region18: #{tpu_custom_call.1} parent=1 // pred_check
      _
    $region19: #{tpu_custom_call.1} parent=1 // pred_check_branch
      %53 = sbr.rel (0) target = $region21
    $region20: #{tpu_custom_call.1} parent=1 // pred_region
      %55 = dma.done [#allocation6], 8192
    $region21: #{tpu_custom_call.1} parent=1 // pred_fallthru
      _
    // Predicated region
    $region22: #{tpu_custom_call.1} parent=1 // pred_check
      _
    $region23: #{tpu_custom_call.1} parent=1 // pred_check_branch
      %57 = sbr.rel (0) target = $region25
    $region24: #{tpu_custom_call.1} parent=1 // pred_region
      %59 = dma.done [#allocation6], 128
    $region25: #{tpu_custom_call.1} parent=1 // pred_fallthru
      _
    %s60 = smul.u32 0, 16
    %s61 = sshra.s32 %s60, 3
    %s62 = sand.u32 %s60, 7
    %s63 = smul.addr %s61, 4
    %s64 = scalar_lea.vmem [#allocation2], %s63
    %v65 = vld [vmem:[%s64] sm:$0xf]
    %v66 = vld [vmem:[%s64 + $0x4] sm:$0xf]
    %v67 = vld [vmem:[#allocation5] sm:$0xff]
    %v68 = vld [vmem:[#allocation5 + $0x8] sm:$0xff]
    %v69 = vld [vmem:[#allocation5 + $0x10] sm:$0xff]
    %v70 = vld [vmem:[#allocation5 + $0x18] sm:$0xff]
    %v71 = vld [vmem:[#allocation5 + $0x20] sm:$0xff]
    %v72 = vld [vmem:[#allocation5 + $0x28] sm:$0xff]
    %v73 = vld [vmem:[#allocation5 + $0x30] sm:$0xff]
    %v74 = vld [vmem:[#allocation5 + $0x38] sm:$0xff]
    %v75 = vld [vmem:[#allocation5 + $0x40] sm:$0xff]
    %v76 = vld [vmem:[#allocation5 + $0x48] sm:$0xff]
    %v77 = vld [vmem:[#allocation5 + $0x50] sm:$0xff]
    %v78 = vld [vmem:[#allocation5 + $0x58] sm:$0xff]
    %v79 = vld [vmem:[#allocation5 + $0x60] sm:$0xff]
    %v80 = vld [vmem:[#allocation5 + $0x68] sm:$0xff]
    %v81 = vld [vmem:[#allocation5 + $0x70] sm:$0xff]
    %v82 = vld [vmem:[#allocation5 + $0x78] sm:$0xff]
    %v83 = vld [vmem:[#allocation5 + $0x80] sm:$0xff]
    %v84 = vld [vmem:[#allocation5 + $0x88] sm:$0xff]
    %v85 = vld [vmem:[#allocation5 + $0x90] sm:$0xff]
    %v86 = vld [vmem:[#allocation5 + $0x98] sm:$0xff]
    %v87 = vld [vmem:[#allocation5 + $0xa0] sm:$0xff]
    %v88 = vld [vmem:[#allocation5 + $0xa8] sm:$0xff]
    %v89 = vld [vmem:[#allocation5 + $0xb0] sm:$0xff]
    %v90 = vld [vmem:[#allocation5 + $0xb8] sm:$0xff]
    %v91 = vld [vmem:[#allocation5 + $0xc0] sm:$0xff]
    %v92 = vld [vmem:[#allocation5 + $0xc8] sm:$0xff]
    %v93 = vld [vmem:[#allocation5 + $0xd0] sm:$0xff]
    %v94 = vld [vmem:[#allocation5 + $0xd8] sm:$0xff]
    %v95 = vld [vmem:[#allocation5 + $0xe0] sm:$0xff]
    %v96 = vld [vmem:[#allocation5 + $0xe8] sm:$0xff]
    %v97 = vld [vmem:[#allocation5 + $0xf0] sm:$0xff]
    %v98 = vld [vmem:[#allocation5 + $0xf8] sm:$0xff]
    %v99 = vld [vmem:[#allocation5 + $0x100] sm:$0xff]
    %v100 = vld [vmem:[#allocation5 + $0x108] sm:$0xff]
    %v101 = vld [vmem:[#allocation5 + $0x110] sm:$0xff]
    %v102 = vld [vmem:[#allocation5 + $0x118] sm:$0xff]
    %v103 = vld [vmem:[#allocation5 + $0x120] sm:$0xff]
    %v104 = vld [vmem:[#allocation5 + $0x128] sm:$0xff]
    %v105 = vld [vmem:[#allocation5 + $0x130] sm:$0xff]
    %v106 = vld [vmem:[#allocation5 + $0x138] sm:$0xff]
    %v107 = vld [vmem:[#allocation5 + $0x140] sm:$0xff]
    %v108 = vld [vmem:[#allocation5 + $0x148] sm:$0xff]
    %v109 = vld [vmem:[#allocation5 + $0x150] sm:$0xff]
    %v110 = vld [vmem:[#allocation5 + $0x158] sm:$0xff]
    %v111 = vld [vmem:[#allocation5 + $0x160] sm:$0xff]
    %v112 = vld [vmem:[#allocation5 + $0x168] sm:$0xff]
    %v113 = vld [vmem:[#allocation5 + $0x170] sm:$0xff]
    %v114 = vld [vmem:[#allocation5 + $0x178] sm:$0xff]
    %v115 = vld [vmem:[#allocation5 + $0x180] sm:$0xff]
    %v116 = vld [vmem:[#allocation5 + $0x188] sm:$0xff]
    %v117 = vld [vmem:[#allocation5 + $0x190] sm:$0xff]
    %v118 = vld [vmem:[#allocation5 + $0x198] sm:$0xff]
    %v119 = vld [vmem:[#allocation5 + $0x1a0] sm:$0xff]
    %v120 = vld [vmem:[#allocation5 + $0x1a8] sm:$0xff]
    %v121 = vld [vmem:[#allocation5 + $0x1b0] sm:$0xff]
    %v122 = vld [vmem:[#allocation5 + $0x1b8] sm:$0xff]
    %v123 = vld [vmem:[#allocation5 + $0x1c0] sm:$0xff]
    %v124 = vld [vmem:[#allocation5 + $0x1c8] sm:$0xff]
    %v125 = vld [vmem:[#allocation5 + $0x1d0] sm:$0xff]
    %v126 = vld [vmem:[#allocation5 + $0x1d8] sm:$0xff]
    %v127 = vld [vmem:[#allocation5 + $0x1e0] sm:$0xff]
    %v128 = vld [vmem:[#allocation5 + $0x1e8] sm:$0xff]
    %v129 = vld [vmem:[#allocation5 + $0x1f0] sm:$0xff]
    %v130 = vld [vmem:[#allocation5 + $0x1f8] sm:$0xff]
    %v131 = vld [vmem:[#allocation7] sm:$0xff]
    %v133 = vperm.slane %v131, 0
    %v134 = vperm.slane %v131, 1
    %v135 = vperm.slane %v131, 2
    %v136 = vperm.slane %v131, 3
    %v137 = vperm.slane %v131, 4
    %v138 = vperm.slane %v131, 5
    %v139 = vperm.slane %v131, 6
    %v140 = vperm.slane %v131, 7
    %v151 = vunpack.c.l.b16 %v65
    %v152 = vunpack.c.l.b16 %v66
    %v153 = vpack.c.b16 %v152, %v151
    %v219 = vunpack.c.l.b16 %v67
    %v220 = vunpack.c.h.b16 %v67
    %v221 = vunpack.c.l.b16 %v68
    %v222 = vunpack.c.h.b16 %v68
    %v223 = vunpack.c.l.b16 %v69
    %v224 = vunpack.c.h.b16 %v69
    %v225 = vunpack.c.l.b16 %v70
    %v226 = vunpack.c.h.b16 %v70
    %v227 = vunpack.c.l.b16 %v71
    %v228 = vunpack.c.h.b16 %v71
    %v229 = vunpack.c.l.b16 %v72
    %v230 = vunpack.c.h.b16 %v72
    %v231 = vunpack.c.l.b16 %v73
    %v232 = vunpack.c.h.b16 %v73
    %v233 = vunpack.c.l.b16 %v74
    %v234 = vunpack.c.h.b16 %v74
    %v235 = vunpack.c.l.b16 %v75
    %v236 = vunpack.c.h.b16 %v75
    %v237 = vunpack.c.l.b16 %v76
    %v238 = vunpack.c.h.b16 %v76
    %v239 = vunpack.c.l.b16 %v77
    %v240 = vunpack.c.h.b16 %v77
    %v241 = vunpack.c.l.b16 %v78
    %v242 = vunpack.c.h.b16 %v78
    %v243 = vunpack.c.l.b16 %v79
    %v244 = vunpack.c.h.b16 %v79
    %v245 = vunpack.c.l.b16 %v80
    %v246 = vunpack.c.h.b16 %v80
    %v247 = vunpack.c.l.b16 %v81
    %v248 = vunpack.c.h.b16 %v81
    %v249 = vunpack.c.l.b16 %v82
    %v250 = vunpack.c.h.b16 %v82
    %v251 = vunpack.c.l.b16 %v83
    %v252 = vunpack.c.h.b16 %v83
    %v253 = vunpack.c.l.b16 %v84
    %v254 = vunpack.c.h.b16 %v84
    %v255 = vunpack.c.l.b16 %v85
    %v256 = vunpack.c.h.b16 %v85
    %v257 = vunpack.c.l.b16 %v86
    %v258 = vunpack.c.h.b16 %v86
    %v259 = vunpack.c.l.b16 %v87
    %v260 = vunpack.c.h.b16 %v87
    %v261 = vunpack.c.l.b16 %v88
    %v262 = vunpack.c.h.b16 %v88
    %v263 = vunpack.c.l.b16 %v89
    %v264 = vunpack.c.h.b16 %v89
    %v265 = vunpack.c.l.b16 %v90
    %v266 = vunpack.c.h.b16 %v90
    %v267 = vunpack.c.l.b16 %v91
    %v268 = vunpack.c.h.b16 %v91
    %v269 = vunpack.c.l.b16 %v92
    %v270 = vunpack.c.h.b16 %v92
    %v271 = vunpack.c.l.b16 %v93
    %v272 = vunpack.c.h.b16 %v93
    %v273 = vunpack.c.l.b16 %v94
    %v274 = vunpack.c.h.b16 %v94
    %v275 = vunpack.c.l.b16 %v95
    %v276 = vunpack.c.h.b16 %v95
    %v277 = vunpack.c.l.b16 %v96
    %v278 = vunpack.c.h.b16 %v96
    %v279 = vunpack.c.l.b16 %v97
    %v280 = vunpack.c.h.b16 %v97
    %v281 = vunpack.c.l.b16 %v98
    %v282 = vunpack.c.h.b16 %v98
    %v283 = vunpack.c.l.b16 %v99
    %v284 = vunpack.c.h.b16 %v99
    %v285 = vunpack.c.l.b16 %v100
    %v286 = vunpack.c.h.b16 %v100
    %v287 = vunpack.c.l.b16 %v101
    %v288 = vunpack.c.h.b16 %v101
    %v289 = vunpack.c.l.b16 %v102
    %v290 = vunpack.c.h.b16 %v102
    %v291 = vunpack.c.l.b16 %v103
    %v292 = vunpack.c.h.b16 %v103
    %v293 = vunpack.c.l.b16 %v104
    %v294 = vunpack.c.h.b16 %v104
    %v295 = vunpack.c.l.b16 %v105
    %v296 = vunpack.c.h.b16 %v105
    %v297 = vunpack.c.l.b16 %v106
    %v298 = vunpack.c.h.b16 %v106
    %v299 = vunpack.c.l.b16 %v107
    %v300 = vunpack.c.h.b16 %v107
    %v301 = vunpack.c.l.b16 %v108
    %v302 = vunpack.c.h.b16 %v108
    %v303 = vunpack.c.l.b16 %v109
    %v304 = vunpack.c.h.b16 %v109
    %v305 = vunpack.c.l.b16 %v110
    %v306 = vunpack.c.h.b16 %v110
    %v307 = vunpack.c.l.b16 %v111
    %v308 = vunpack.c.h.b16 %v111
    %v309 = vunpack.c.l.b16 %v112
    %v310 = vunpack.c.h.b16 %v112
    %v311 = vunpack.c.l.b16 %v113
    %v312 = vunpack.c.h.b16 %v113
    %v313 = vunpack.c.l.b16 %v114
    %v314 = vunpack.c.h.b16 %v114
    %v315 = vunpack.c.l.b16 %v115
    %v316 = vunpack.c.h.b16 %v115
    %v317 = vunpack.c.l.b16 %v116
    %v318 = vunpack.c.h.b16 %v116
    %v319 = vunpack.c.l.b16 %v117
    %v320 = vunpack.c.h.b16 %v117
    %v321 = vunpack.c.l.b16 %v118
    %v322 = vunpack.c.h.b16 %v118
    %v323 = vunpack.c.l.b16 %v119
    %v324 = vunpack.c.h.b16 %v119
    %v325 = vunpack.c.l.b16 %v120
    %v326 = vunpack.c.h.b16 %v120
    %v327 = vunpack.c.l.b16 %v121
    %v328 = vunpack.c.h.b16 %v121
    %v329 = vunpack.c.l.b16 %v122
    %v330 = vunpack.c.h.b16 %v122
    %v331 = vunpack.c.l.b16 %v123
    %v332 = vunpack.c.h.b16 %v123
    %v333 = vunpack.c.l.b16 %v124
    %v334 = vunpack.c.h.b16 %v124
    %v335 = vunpack.c.l.b16 %v125
    %v336 = vunpack.c.h.b16 %v125
    %v337 = vunpack.c.l.b16 %v126
    %v338 = vunpack.c.h.b16 %v126
    %v339 = vunpack.c.l.b16 %v127
    %v340 = vunpack.c.h.b16 %v127
    %v341 = vunpack.c.l.b16 %v128
    %v342 = vunpack.c.h.b16 %v128
    %v343 = vunpack.c.l.b16 %v129
    %v344 = vunpack.c.h.b16 %v129
    %v345 = vunpack.c.l.b16 %v130
    %v346 = vunpack.c.h.b16 %v130
    %v347 = vpack.c.b16 %v227, %v219
    %v348 = vpack.c.b16 %v228, %v220
    %v349 = vpack.c.b16 %v229, %v221
    %v350 = vpack.c.b16 %v230, %v222
    %v351 = vpack.c.b16 %v231, %v223
    %v352 = vpack.c.b16 %v232, %v224
    %v353 = vpack.c.b16 %v233, %v225
    %v354 = vpack.c.b16 %v234, %v226
    %v355 = vpack.c.b16 %v243, %v235
    %v356 = vpack.c.b16 %v244, %v236
    %v357 = vpack.c.b16 %v245, %v237
    %v358 = vpack.c.b16 %v246, %v238
    %v359 = vpack.c.b16 %v247, %v239
    %v360 = vpack.c.b16 %v248, %v240
    %v361 = vpack.c.b16 %v249, %v241
    %v362 = vpack.c.b16 %v250, %v242
    %v363 = vpack.c.b16 %v259, %v251
    %v364 = vpack.c.b16 %v260, %v252
    %v365 = vpack.c.b16 %v261, %v253
    %v366 = vpack.c.b16 %v262, %v254
    %v367 = vpack.c.b16 %v263, %v255
    %v368 = vpack.c.b16 %v264, %v256
    %v369 = vpack.c.b16 %v265, %v257
    %v370 = vpack.c.b16 %v266, %v258
    %v371 = vpack.c.b16 %v275, %v267
    %v372 = vpack.c.b16 %v276, %v268
    %v373 = vpack.c.b16 %v277, %v269
    %v374 = vpack.c.b16 %v278, %v270
    %v375 = vpack.c.b16 %v279, %v271
    %v376 = vpack.c.b16 %v280, %v272
    %v377 = vpack.c.b16 %v281, %v273
    %v378 = vpack.c.b16 %v282, %v274
    %v379 = vpack.c.b16 %v291, %v283
    %v380 = vpack.c.b16 %v292, %v284
    %v381 = vpack.c.b16 %v293, %v285
    %v382 = vpack.c.b16 %v294, %v286
    %v383 = vpack.c.b16 %v295, %v287
    %v384 = vpack.c.b16 %v296, %v288
    %v385 = vpack.c.b16 %v297, %v289
    %v386 = vpack.c.b16 %v298, %v290
    %v387 = vpack.c.b16 %v307, %v299
    %v388 = vpack.c.b16 %v308, %v300
    %v389 = vpack.c.b16 %v309, %v301
    %v390 = vpack.c.b16 %v310, %v302
    %v391 = vpack.c.b16 %v311, %v303
    %v392 = vpack.c.b16 %v312, %v304
    %v393 = vpack.c.b16 %v313, %v305
    %v394 = vpack.c.b16 %v314, %v306
    %v395 = vpack.c.b16 %v323, %v315
    %v396 = vpack.c.b16 %v324, %v316
    %v397 = vpack.c.b16 %v325, %v317
    %v398 = vpack.c.b16 %v326, %v318
    %v399 = vpack.c.b16 %v327, %v319
    %v400 = vpack.c.b16 %v328, %v320
    %v401 = vpack.c.b16 %v329, %v321
    %v402 = vpack.c.b16 %v330, %v322
    %v403 = vpack.c.b16 %v339, %v331
    %v404 = vpack.c.b16 %v340, %v332
    %v405 = vpack.c.b16 %v341, %v333
    %v406 = vpack.c.b16 %v342, %v334
    %v407 = vpack.c.b16 %v343, %v335
    %v408 = vpack.c.b16 %v344, %v336
    %v409 = vpack.c.b16 %v345, %v337
    %v410 = vpack.c.b16 %v346, %v338
    %475 = vmatpush.bf16.msra.mxu0 %v403
    %476 = vmatpush.bf16.msra.mxu0 %v395
    %477 = vmatpush.bf16.msra.mxu0 %v387
    %478 = vmatpush.bf16.msra.mxu0 %v379
    %479 = vmatpush.bf16.msra.mxu0 %v371
    %480 = vmatpush.bf16.msra.mxu0 %v363
    %481 = vmatpush.bf16.msra.mxu0 %v355
    %482 = vmatpush.bf16.msra.mxu0 %v347
    %483 = vmatmul.bf16.gmra.mxu0 %v153
    %v484 = vpop.f32.mrf.mxu0
    %v485 = vadd.f32 %v133, %v484
    %v486 = vpop.f32.mrf.mxu0
    %v487 = vadd.f32 %v133, %v486
    %488 = vdwg.mxu0
    %489 = vmatpush.bf16.msra.mxu0 %v404
    %490 = vmatpush.bf16.msra.mxu0 %v396
    %491 = vmatpush.bf16.msra.mxu0 %v388
    %492 = vmatpush.bf16.msra.mxu0 %v380
    %493 = vmatpush.bf16.msra.mxu0 %v372
    %494 = vmatpush.bf16.msra.mxu0 %v364
    %495 = vmatpush.bf16.msra.mxu0 %v356
    %496 = vmatpush.bf16.msra.mxu0 %v348
    %497 = vmatmul.bf16.gmra.mxu0 %v153
    %v498 = vpop.f32.mrf.mxu0
    %v499 = vadd.f32 %v134, %v498
    %v500 = vpop.f32.mrf.mxu0
    %v501 = vadd.f32 %v134, %v500
    %502 = vdwg.mxu0
    %503 = vmatpush.bf16.msra.mxu0 %v405
    %504 = vmatpush.bf16.msra.mxu0 %v397
    %505 = vmatpush.bf16.msra.mxu0 %v389
    %506 = vmatpush.bf16.msra.mxu0 %v381
    %507 = vmatpush.bf16.msra.mxu0 %v373
    %508 = vmatpush.bf16.msra.mxu0 %v365
    %509 = vmatpush.bf16.msra.mxu0 %v357
    %510 = vmatpush.bf16.msra.mxu0 %v349
    %511 = vmatmul.bf16.gmra.mxu0 %v153
    %v512 = vpop.f32.mrf.mxu0
    %v513 = vadd.f32 %v135, %v512
    %v514 = vpop.f32.mrf.mxu0
    %v515 = vadd.f32 %v135, %v514
    %516 = vdwg.mxu0
    %517 = vmatpush.bf16.msra.mxu0 %v406
    %518 = vmatpush.bf16.msra.mxu0 %v398
    %519 = vmatpush.bf16.msra.mxu0 %v390
    %520 = vmatpush.bf16.msra.mxu0 %v382
    %521 = vmatpush.bf16.msra.mxu0 %v374
    %522 = vmatpush.bf16.msra.mxu0 %v366
    %523 = vmatpush.bf16.msra.mxu0 %v358
    %524 = vmatpush.bf16.msra.mxu0 %v350
    %525 = vmatmul.bf16.gmra.mxu0 %v153
    %v526 = vpop.f32.mrf.mxu0
    %v527 = vadd.f32 %v136, %v526
    %v528 = vpop.f32.mrf.mxu0
    %v529 = vadd.f32 %v136, %v528
    %530 = vdwg.mxu0
    %531 = vmatpush.bf16.msra.mxu0 %v407
    %532 = vmatpush.bf16.msra.mxu0 %v399
    %533 = vmatpush.bf16.msra.mxu0 %v391
    %534 = vmatpush.bf16.msra.mxu0 %v383
    %535 = vmatpush.bf16.msra.mxu0 %v375
    %536 = vmatpush.bf16.msra.mxu0 %v367
    %537 = vmatpush.bf16.msra.mxu0 %v359
    %538 = vmatpush.bf16.msra.mxu0 %v351
    %539 = vmatmul.bf16.gmra.mxu0 %v153
    %v540 = vpop.f32.mrf.mxu0
    %v541 = vadd.f32 %v137, %v540
    %v542 = vpop.f32.mrf.mxu0
    %v543 = vadd.f32 %v137, %v542
    %544 = vdwg.mxu0
    %545 = vmatpush.bf16.msra.mxu0 %v408
    %546 = vmatpush.bf16.msra.mxu0 %v400
    %547 = vmatpush.bf16.msra.mxu0 %v392
    %548 = vmatpush.bf16.msra.mxu0 %v384
    %549 = vmatpush.bf16.msra.mxu0 %v376
    %550 = vmatpush.bf16.msra.mxu0 %v368
    %551 = vmatpush.bf16.msra.mxu0 %v360
    %552 = vmatpush.bf16.msra.mxu0 %v352
    %553 = vmatmul.bf16.gmra.mxu0 %v153
    %v554 = vpop.f32.mrf.mxu0
    %v555 = vadd.f32 %v138, %v554
    %v556 = vpop.f32.mrf.mxu0
    %v557 = vadd.f32 %v138, %v556
    %558 = vdwg.mxu0
    %559 = vmatpush.bf16.msra.mxu0 %v409
    %560 = vmatpush.bf16.msra.mxu0 %v401
    %561 = vmatpush.bf16.msra.mxu0 %v393
    %562 = vmatpush.bf16.msra.mxu0 %v385
    %563 = vmatpush.bf16.msra.mxu0 %v377
    %564 = vmatpush.bf16.msra.mxu0 %v369
    %565 = vmatpush.bf16.msra.mxu0 %v361
    %566 = vmatpush.bf16.msra.mxu0 %v353
    %567 = vmatmul.bf16.gmra.mxu0 %v153
    %v568 = vpop.f32.mrf.mxu0
    %v569 = vadd.f32 %v139, %v568
    %v570 = vpop.f32.mrf.mxu0
    %v571 = vadd.f32 %v139, %v570
    %572 = vdwg.mxu0
    %573 = vmatpush.bf16.msra.mxu0 %v410
    %574 = vmatpush.bf16.msra.mxu0 %v402
    %575 = vmatpush.bf16.msra.mxu0 %v394
    %576 = vmatpush.bf16.msra.mxu0 %v386
    %577 = vmatpush.bf16.msra.mxu0 %v378
    %578 = vmatpush.bf16.msra.mxu0 %v370
    %579 = vmatpush.bf16.msra.mxu0 %v362
    %580 = vmatpush.bf16.msra.mxu0 %v354
    %581 = vmatmul.bf16.gmra.mxu0 %v153
    %v582 = vpop.f32.mrf.mxu0
    %v583 = vadd.f32 %v140, %v582
    %v584 = vpop.f32.mrf.mxu0
    %v585 = vadd.f32 %v140, %v584
    %586 = vdwg.mxu0
    %587 = vst [vmem:[#allocation8] sm:$0xff] %v485
    %588 = vst [vmem:[#allocation8 + $0x8] sm:$0xff] %v499
    %589 = vst [vmem:[#allocation8 + $0x10] sm:$0xff] %v513
    %590 = vst [vmem:[#allocation8 + $0x18] sm:$0xff] %v527
    %591 = vst [vmem:[#allocation8 + $0x20] sm:$0xff] %v541
    %592 = vst [vmem:[#allocation8 + $0x28] sm:$0xff] %v555
    %593 = vst [vmem:[#allocation8 + $0x30] sm:$0xff] %v569
    %594 = vst [vmem:[#allocation8 + $0x38] sm:$0xff] %v583
    %595 = vst [vmem:[#allocation8 + $0x40] sm:$0xff] %v487
    %596 = vst [vmem:[#allocation8 + $0x48] sm:$0xff] %v501
    %597 = vst [vmem:[#allocation8 + $0x50] sm:$0xff] %v515
    %598 = vst [vmem:[#allocation8 + $0x58] sm:$0xff] %v529
    %599 = vst [vmem:[#allocation8 + $0x60] sm:$0xff] %v543
    %600 = vst [vmem:[#allocation8 + $0x68] sm:$0xff] %v557
    %601 = vst [vmem:[#allocation8 + $0x70] sm:$0xff] %v571
    %602 = vst [vmem:[#allocation8 + $0x78] sm:$0xff] %v585
    // Predicated region
    $region26: #{tpu_custom_call.1} parent=1 // pred_check
      _
    $region27: #{tpu_custom_call.1} parent=1 // pred_check_branch
      %604 = sbr.rel (0) target = $region29
    $region28: #{tpu_custom_call.1} parent=1 // pred_region
      %606 = vsyncadd [#allocation4], 0
      %s607 = sshll.u32 [#allocation8], 4
      %s608 = int_to_ptr.vmem [resolvable:$true] %s607
      %s609 = sshll.u32 %s3, 4
      %s610 = int_to_ptr.hbm [resolvable:$true] %s609
      %615 = dma.vmem_to_hbm [thread:$0]  %s608, 2048, %s610, [#allocation4], 1024, 1024, 64
    $region29: #{tpu_custom_call.1} parent=1 // pred_fallthru
      _
    // Predicated region
    $region30: #{tpu_custom_call.1} parent=1 // pred_check
      _
    $region31: #{tpu_custom_call.1} parent=1 // pred_check_branch
      %617 = sbr.rel (0) target = $region33
    $region32: #{tpu_custom_call.1} parent=1 // pred_region
      %619 = dma.done [#allocation4], 2048
    $region33: #{tpu_custom_call.1} parent=1 // pred_fallthru
      _
    %620 = vsyncpa [#allocation3], 1
    %621 = vsyncpa [#allocation6], 1
    %622 = vsyncpa [#allocation4], 1

</llo_original>
